<compile_context>
chip_gen: v7x
topology: tpu7x:2x2x1
jax: 0.10.0
libtpu: 0.0.40
codegen_flags: <defaults>
</compile_context>

<pallas_src>
import functools

import jax
import jax.numpy as jnp
from jax import lax
from jax.experimental import pallas as pl
from jax.experimental.pallas import tpu as pltpu


def _shift_aug_kernel(dx_ref, dy_ref, x_ref, out_ref, t_ref, *, height, interp_dtype):
    # dx_ref, dy_ref: (N,) int32 in SMEM (scalar prefetch) — per-image column / row offsets
    #                 in [-pad, pad].
    # x_ref:  (B, C*H, W) input block (native dtype, cast in-kernel)
    # out_ref:(B, C*H, W) float32 output block
    # t_ref:  (C*H, W) VMEM scratch (interp_dtype) holding the row-gathered image
    B, CH, W = x_ref.shape
    H = height
    C = CH // H
    base = pl.program_id(0) * B

    def per_image(b, carry):
        idx = base + b
        dx = dx_ref[idx]
        dy = dy_ref[idx]

        # One-hot clamped-shift gather matrices, built directly from iotas (no padded-size
        # intermediates, no gather-matrix folding matmuls).
        #   gy[i, h] = 1  iff  clamp(i + dy, 0, H-1) == h      (row gather)
        #   gx[j, w] = 1  iff  clamp(j + dx, 0, W-1) == w      (column gather)
        i_out = lax.broadcasted_iota(jnp.int32, (H, H), 0)
        h_src = lax.broadcasted_iota(jnp.int32, (H, H), 1)
        gy = (jnp.clip(i_out + dy, 0, H - 1) == h_src).astype(jnp.float32).astype(interp_dtype)

        j_out = lax.broadcasted_iota(jnp.int32, (W, W), 0)
        w_src = lax.broadcasted_iota(jnp.int32, (W, W), 1)
        gx = (jnp.clip(j_out + dx, 0, W - 1) == w_src).astype(jnp.float32).astype(interp_dtype)

        # (1) Row gather, one channel at a time. A Python loop (rather than fori) keeps the
        #     per-channel sublane offsets static; each iteration is load -> matmul -> store to
        #     the VMEM scratch, so vreg live ranges stay bounded.
        for c in range(C):
            rows = slice(c * H, (c + 1) * H)
            xc = x_ref[b, rows, :].astype(interp_dtype)                       # (H, W)
            t_ref[rows, :] = jnp.dot(
                gy, xc, preferred_element_type=jnp.float32).astype(interp_dtype)

        # (2) Column gather for all channels at once: one (C*H, W) x (W, W)^T matmul
        #     (M = C*H keeps the MXU pipe full), stored as a single (C*H, W) slab.
        o = lax.dot_general(t_ref[...], gx, (((1,), (1,)), ((), ())),
                            preferred_element_type=jnp.float32)              # (C*H, W)
        out_ref[b] = o.astype(out_ref.dtype)
        return carry

    lax.fori_loop(0, B, per_image, 0, unroll=True)


def _pick_block(n, max_block=8):
    """Largest divisor of n that is <= max_block, preferring a grid length >= 2 (v7x megacore)."""
    divisors = [d for d in range(1, min(n, max_block) + 1) if n % d == 0]
    two_plus = [d for d in divisors if n // d >= 2]
    return max(two_plus) if two_plus else max(divisors)


def _draw_shifts(key, n, pad):
    # TODO(synk): torch.randint's RNG stream cannot be reproduced bit-for-bit; jax.random.randint
    # gives the same U{0..2*pad} per-image distribution deterministically from the PRNGKey.
    return jax.random.randint(key, (n, 2), 0, 2 * pad + 1)   # [:, 0] = x-shift, [:, 1] = y-shift


def shift_aug(x, key, pad=3, block_n=None, interp_dtype=jnp.bfloat16):
    n, c, h, w = x.shape
    assert h == w  # matches the PyTorch module's assertion (kernel itself handles H != W)

    shifts = _draw_shifts(key, n, pad)
    dx = (shifts[:, 0] - pad).astype(jnp.int32)   # column offsets in [-pad, pad]
    dy = (shifts[:, 1] - pad).astype(jnp.int32)   # row offsets in [-pad, pad]

    bn = block_n if block_n is not None else _pick_block(n)
    assert n % bn == 0

    # Free reshape (row-major bitcast): fold channels into the matmul M dimension. The input
    # keeps its native dtype (uint8 / bf16 / f32) — the kernel casts internally.
    x2d = x.reshape(n, c * h, w)

    kernel = functools.partial(_shift_aug_kernel, height=h, interp_dtype=interp_dtype)
    out2d = pl.pallas_call(
        kernel,
        out_shape=jax.ShapeDtypeStruct((n, c * h, w), jnp.float32),
        grid_spec=pltpu.PrefetchScalarGridSpec(
            num_scalar_prefetch=2,                      # dx, dy land in SMEM
            grid=(n // bn,),
            in_specs=[
                pl.BlockSpec((bn, c * h, w), lambda i, dx_r, dy_r: (i, 0, 0)),
            ],
            out_specs=pl.BlockSpec((bn, c * h, w), lambda i, dx_r, dy_r: (i, 0, 0)),
            scratch_shapes=[pltpu.VMEM((c * h, w), interp_dtype)],
        ),
        compiler_params=pltpu.CompilerParams(
            dimension_semantics=("parallel",),
            vmem_limit_bytes=32 * 1024 * 1024,
        ),
    )(dx, dy, x2d)
    return out2d.reshape(n, c, h, w)


# ----------------------------------------------------------------------------------------------
# Pure-JAX references for correctness checking.

def shift_aug_ref_gather(x, key, pad=3):
    """Exact semantics: clamped integer 2-D shift (what grid_sample does here, up to f32 eps)."""
    n, c, h, w = x.shape
    shifts = _draw_shifts(key, n, pad)
    dx = shifts[:, 0] - pad
    dy = shifts[:, 1] - pad
    rows = jnp.clip(jnp.arange(h)[None, :] + dy[:, None], 0, h - 1)   # (n, h)
    cols = jnp.clip(jnp.arange(w)[None, :] + dx[:, None], 0, w - 1)   # (n, w)
    xf = x.astype(jnp.float32)

    def one(img, r, cc):
        return img[:, r, :][:, :, cc]

    return jax.vmap(one)(xf, rows, cols)


def shift_aug_ref_bilinear(x, key, pad=3):
    """Literal port of the PyTorch replicate-pad + bilinear grid_sample math."""
    n, c, h, w = x.shape
    s = h + 2 * pad
    eps = 1.0 / s
    arange = jnp.linspace(-1.0 + eps, 1.0 - eps, s, dtype=jnp.float32)[:h]
    shift = _draw_shifts(key, n, pad).astype(jnp.float32) * (2.0 / s)
    gx = arange[None, :] + shift[:, 0:1]
    gy = arange[None, :] + shift[:, 1:2]
    px = ((gx + 1.0) * s - 1.0) * 0.5                                    # (n, w)
    py = ((gy + 1.0) * s - 1.0) * 0.5                                    # (n, h)
    xp = jnp.pad(x.astype(jnp.float32),
                 ((0, 0), (0, 0), (pad, pad), (pad, pad)), mode='edge')
    sid = jnp.arange(s, dtype=jnp.float32)
    wy = jnp.maximum(0.0, 1.0 - jnp.abs(py[:, :, None] - sid[None, None, :]))   # (n, h, s)
    wx = jnp.maximum(0.0, 1.0 - jnp.abs(px[:, :, None] - sid[None, None, :]))   # (n, w, s)
    return jnp.einsum('nis,ncst,njt->ncij', wy, xp, wx)


if __name__ == "__main__":
    key = jax.random.PRNGKey(0)
    k_img, k_shift = jax.random.split(key)

    N, C, H, W = 2, 4, 16, 16
    # Integer pixel values (exactly representable in bf16), mimicking uint8 images cast to float.
    x = jnp.round(jax.random.uniform(k_img, (N, C, H, W), dtype=jnp.float32) * 255.0)

    out = jax.block_until_ready(shift_aug(x, k_shift, pad=3))
    assert out.shape == (N, C, H, W) and out.dtype == jnp.float32

    ref_g = jax.block_until_ready(shift_aug_ref_gather(x, k_shift, pad=3))
    assert jnp.allclose(out, ref_g, atol=1e-5), "mismatch vs integer-gather reference"

    ref_b = jax.block_until_ready(shift_aug_ref_bilinear(x, k_shift, pad=3))
    assert jnp.allclose(out, ref_b, atol=1e-2), "mismatch vs bilinear grid_sample reference"

    print("KERNEL_OK")
</pallas_src>

<mosaic_0001>
module attributes {stable_mosaic.version = 11 : i64} {
  func.func @_shift_aug_kernel(%arg0: i32, %arg1: memref<2xi32, #tpu.memory_space<smem>>, %arg2: memref<2xi32, #tpu.memory_space<smem>>, %arg3: memref<1x64x16xf32, #tpu.memory_space<vmem>>, %arg4: memref<1x64x16xf32, #tpu.memory_space<vmem>>, %arg5: memref<64x16xbf16, #tpu.memory_space<vmem>>) attributes {dimension_semantics = [#tpu.dimension_semantics<parallel>], iteration_bounds = array<i64: 2>, scalar_prefetch = 2 : i64, scratch_operands = 1 : i64, tpu.core_type = #tpu.core_type<tc>, window_params = [{transform_indices = @transform_0, window_bounds = array<i64: 1, 64, 16>}, {transform_indices = @transform_1, window_bounds = array<i64: 1, 64, 16>}]} {
    %c1_i32 = arith.constant 1 : i32
    %0 = arith.muli %arg0, %c1_i32 : i32
    %c0_i32 = arith.constant 0 : i32
    %1 = arith.addi %0, %c0_i32 : i32
    %2 = arith.index_cast %1 : i32 to index
    %3 = memref.load %arg1[%2] : memref<2xi32, #tpu.memory_space<smem>>
    %4 = arith.index_cast %1 : i32 to index
    %5 = memref.load %arg2[%4] : memref<2xi32, #tpu.memory_space<smem>>
    %6 = tpu.iota {dimensions = array<i32: 0>} : vector<16x16xi32>
    %7 = tpu.iota {dimensions = array<i32: 1>} : vector<16x16xi32>
    %8 = vector.broadcast %5 : i32 to vector<16x16xi32>
    %9 = arith.addi %6, %8 : vector<16x16xi32>
    %c0_i32_0 = arith.constant 0 : i32
    %c15_i32 = arith.constant 15 : i32
    %10 = vector.broadcast %c0_i32_0 : i32 to vector<16x16xi32>
    %11 = arith.maxsi %10, %9 : vector<16x16xi32>
    %12 = vector.broadcast %c15_i32 : i32 to vector<16x16xi32>
    %13 = arith.minsi %12, %11 : vector<16x16xi32>
    %14 = arith.cmpi eq, %13, %7 : vector<16x16xi32>
    %15 = arith.extui %14 : vector<16x16xi1> to vector<16x16xi32>
    %16 = arith.sitofp %15 : vector<16x16xi32> to vector<16x16xf32>
    %17 = arith.truncf %16 : vector<16x16xf32> to vector<16x16xbf16>
    %18 = tpu.iota {dimensions = array<i32: 0>} : vector<16x16xi32>
    %19 = tpu.iota {dimensions = array<i32: 1>} : vector<16x16xi32>
    %20 = vector.broadcast %3 : i32 to vector<16x16xi32>
    %21 = arith.addi %18, %20 : vector<16x16xi32>
    %c0_i32_1 = arith.constant 0 : i32
    %c15_i32_2 = arith.constant 15 : i32
    %22 = vector.broadcast %c0_i32_1 : i32 to vector<16x16xi32>
    %23 = arith.maxsi %22, %21 : vector<16x16xi32>
    %24 = vector.broadcast %c15_i32_2 : i32 to vector<16x16xi32>
    %25 = arith.minsi %24, %23 : vector<16x16xi32>
    %26 = arith.cmpi eq, %25, %19 : vector<16x16xi32>
    %27 = arith.extui %26 : vector<16x16xi1> to vector<16x16xi32>
    %28 = arith.sitofp %27 : vector<16x16xi32> to vector<16x16xf32>
    %29 = arith.truncf %28 : vector<16x16xf32> to vector<16x16xbf16>
    %30 = arith.index_cast %c0_i32 : i32 to index
    %c0 = arith.constant 0 : index
    %c0_3 = arith.constant 0 : index
    %31 = vector.load %arg3[%30, %c0, %c0_3] : memref<1x64x16xf32, #tpu.memory_space<vmem>>, vector<1x16x16xf32>
    %32 = vector.shape_cast %31 : vector<1x16x16xf32> to vector<16x16xf32>
    %33 = arith.truncf %32 : vector<16x16xf32> to vector<16x16xbf16>
    %cst = arith.constant dense<0.000000e+00> : vector<16x16xf32>
    %34 = tpu.matmul %17, %33, %cst {dimension_numbers = #tpu.dot_dimension_numbers<[1], [0], [0], [1], [0, 0, 1, 1], [], []>} : vector<16x16xbf16>, vector<16x16xbf16>, vector<16x16xf32> -> vector<16x16xf32>
    %35 = arith.truncf %34 : vector<16x16xf32> to vector<16x16xbf16>
    %c0_4 = arith.constant 0 : index
    %c0_5 = arith.constant 0 : index
    %36 = vector.load %arg5[%c0_4, %c0_5] : memref<64x16xbf16, #tpu.memory_space<vmem>>, vector<16x16xbf16>
    tpu.vector_store %arg5[%c0_4, %c0_5], %35 {strides = array<i32>} : memref<64x16xbf16, #tpu.memory_space<vmem>>, vector<16x16xbf16>,
    %37 = arith.index_cast %c0_i32 : i32 to index
    %c16 = arith.constant 16 : index
    %c0_6 = arith.constant 0 : index
    %38 = vector.load %arg3[%37, %c16, %c0_6] : memref<1x64x16xf32, #tpu.memory_space<vmem>>, vector<1x16x16xf32>
    %39 = vector.shape_cast %38 : vector<1x16x16xf32> to vector<16x16xf32>
    %40 = arith.truncf %39 : vector<16x16xf32> to vector<16x16xbf16>
    %cst_7 = arith.constant dense<0.000000e+00> : vector<16x16xf32>
    %41 = tpu.matmul %17, %40, %cst_7 {dimension_numbers = #tpu.dot_dimension_numbers<[1], [0], [0], [1], [0, 0, 1, 1], [], []>} : vector<16x16xbf16>, vector<16x16xbf16>, vector<16x16xf32> -> vector<16x16xf32>
    %42 = arith.truncf %41 : vector<16x16xf32> to vector<16x16xbf16>
    %c16_8 = arith.constant 16 : index
    %c0_9 = arith.constant 0 : index
    %43 = vector.load %arg5[%c16_8, %c0_9] : memref<64x16xbf16, #tpu.memory_space<vmem>>, vector<16x16xbf16>
    tpu.vector_store %arg5[%c16_8, %c0_9], %42 {strides = array<i32>} : memref<64x16xbf16, #tpu.memory_space<vmem>>, vector<16x16xbf16>,
    %44 = arith.index_cast %c0_i32 : i32 to index
    %c32 = arith.constant 32 : index
    %c0_10 = arith.constant 0 : index
    %45 = vector.load %arg3[%44, %c32, %c0_10] : memref<1x64x16xf32, #tpu.memory_space<vmem>>, vector<1x16x16xf32>
    %46 = vector.shape_cast %45 : vector<1x16x16xf32> to vector<16x16xf32>
    %47 = arith.truncf %46 : vector<16x16xf32> to vector<16x16xbf16>
    %cst_11 = arith.constant dense<0.000000e+00> : vector<16x16xf32>
    %48 = tpu.matmul %17, %47, %cst_11 {dimension_numbers = #tpu.dot_dimension_numbers<[1], [0], [0], [1], [0, 0, 1, 1], [], []>} : vector<16x16xbf16>, vector<16x16xbf16>, vector<16x16xf32> -> vector<16x16xf32>
    %49 = arith.truncf %48 : vector<16x16xf32> to vector<16x16xbf16>
    %c32_12 = arith.constant 32 : index
    %c0_13 = arith.constant 0 : index
    %50 = vector.load %arg5[%c32_12, %c0_13] : memref<64x16xbf16, #tpu.memory_space<vmem>>, vector<16x16xbf16>
    tpu.vector_store %arg5[%c32_12, %c0_13], %49 {strides = array<i32>} : memref<64x16xbf16, #tpu.memory_space<vmem>>, vector<16x16xbf16>,
    %51 = arith.index_cast %c0_i32 : i32 to index
    %c48 = arith.constant 48 : index
    %c0_14 = arith.constant 0 : index
    %52 = vector.load %arg3[%51, %c48, %c0_14] : memref<1x64x16xf32, #tpu.memory_space<vmem>>, vector<1x16x16xf32>
    %53 = vector.shape_cast %52 : vector<1x16x16xf32> to vector<16x16xf32>
    %54 = arith.truncf %53 : vector<16x16xf32> to vector<16x16xbf16>
    %cst_15 = arith.constant dense<0.000000e+00> : vector<16x16xf32>
    %55 = tpu.matmul %17, %54, %cst_15 {dimension_numbers = #tpu.dot_dimension_numbers<[1], [0], [0], [1], [0, 0, 1, 1], [], []>} : vector<16x16xbf16>, vector<16x16xbf16>, vector<16x16xf32> -> vector<16x16xf32>
    %56 = arith.truncf %55 : vector<16x16xf32> to vector<16x16xbf16>
    %c48_16 = arith.constant 48 : index
    %c0_17 = arith.constant 0 : index
    %57 = vector.load %arg5[%c48_16, %c0_17] : memref<64x16xbf16, #tpu.memory_space<vmem>>, vector<16x16xbf16>
    tpu.vector_store %arg5[%c48_16, %c0_17], %56 {strides = array<i32>} : memref<64x16xbf16, #tpu.memory_space<vmem>>, vector<16x16xbf16>,
    %c0_18 = arith.constant 0 : index
    %c0_19 = arith.constant 0 : index
    %58 = vector.load %arg5[%c0_18, %c0_19] : memref<64x16xbf16, #tpu.memory_space<vmem>>, vector<64x16xbf16>
    %cst_20 = arith.constant dense<0.000000e+00> : vector<64x16xf32>
    %59 = tpu.matmul %58, %29, %cst_20 {dimension_numbers = #tpu.dot_dimension_numbers<[1], [1], [0], [0], [0, 0, 1, 0], [], []>} : vector<64x16xbf16>, vector<16x16xbf16>, vector<64x16xf32> -> vector<64x16xf32>
    %60 = arith.index_cast %c0_i32 : i32 to index
    %c0_21 = arith.constant 0 : index
    %c0_22 = arith.constant 0 : index
    %61 = vector.load %arg4[%60, %c0_21, %c0_22] : memref<1x64x16xf32, #tpu.memory_space<vmem>>, vector<1x64x16xf32>
    %62 = vector.shape_cast %61 : vector<1x64x16xf32> to vector<64x16xf32>
    %63 = vector.shape_cast %59 : vector<64x16xf32> to vector<1x64x16xf32>
    tpu.vector_store %arg4[%60, %c0_21, %c0_22], %63 {strides = array<i32>} : memref<1x64x16xf32, #tpu.memory_space<vmem>>, vector<1x64x16xf32>,
    %c1_i32_23 = arith.constant 1 : i32
    return
  }
  func.func @transform_0(%arg0: i32, %arg1: memref<2xi32, #tpu.memory_space<smem>>, %arg2: memref<2xi32, #tpu.memory_space<smem>>) -> (i32, i32, i32) {
    %c0_i32 = arith.constant 0 : i32
    %c0_i32_0 = arith.constant 0 : i32
    %c0_i32_1 = arith.constant 0 : i32
    return %arg0, %c0_i32, %c0_i32_0 : i32, i32, i32
  }
  func.func @transform_1(%arg0: i32, %arg1: memref<2xi32, #tpu.memory_space<smem>>, %arg2: memref<2xi32, #tpu.memory_space<smem>>) -> (i32, i32, i32) {
    %c0_i32 = arith.constant 0 : i32
    %c0_i32_0 = arith.constant 0 : i32
    %c0_i32_1 = arith.constant 0 : i32
    return %arg0, %c0_i32, %c0_i32_0 : i32, i32, i32
  }
}

</mosaic_0001>

<llo_original>
// kernel: tpu_custom_call.1
$region0: #{tpu_custom_call.1}
  #allocation0 [shape = 'u32[]', space=smem, size = 0x4, offset = 0x4, fixed_abs, tag = 'smem constant byte address 0x4 - core index']
  #allocation1 [shape = 'u32[144,128]{1,0:T(1,128)}', space=vmem, size = 0x12000, scoped, tag = 'internal scratch']
  #allocation2 [shape = 'bf16[64,16]{1,0:T(16,128)(2,1)}', space=vmem, size = 0x4000, scoped, tag = 'scratch operand']
  #allocation3 [shape = 's32[1]{0}', space=sflag, size = 0x4, scoped, tag = 'scoped memory for tpu_custom_call.1']
  #allocation4 [shape = 'u8[512]{0}', space=smem, size = 0x200, scoped, tag = 'prefetched SMEM operand 0']
  #allocation5 [shape = 'u8[512]{0}', space=smem, size = 0x200, scoped, tag = 'prefetched SMEM operand 1']
  %s0 = inlined_call_operand.vmem [shape: s32[2], index: 0, kind: input, shape index: {}]
  %s1 = inlined_call_operand.vmem [shape: s32[2], index: 1, kind: input, shape index: {}]
  %s2 = inlined_call_operand.vmem [shape: f32[2,64,16], index: 2, kind: input, shape index: {}]
  %s3 = inlined_call_operand.vmem [shape: f32[2,64,16], index: 3, kind: output, shape index: {}]
  %s4 = sld [smem:[#allocation0]]
  $region37: #{tpu_custom_call.1} parent=0
    _
  %s6 = ssub.s32 1, %s4
  %s7 = scalar_select 0, %s6, %s4
  %s8 = sshll.u32 %s0, 4
  %s9 = int_to_ptr.vmem [resolvable:$true] %s8
  %11 = dma.vmem_to_smem %s9, 16, [#allocation4], [#allocation3]
  %s12 = sshll.u32 %s1, 4
  %s13 = int_to_ptr.vmem [resolvable:$true] %s12
  %15 = dma.vmem_to_smem %s13, 16, [#allocation5], [#allocation3]
  %16 = dma.done [#allocation3], 32
  %17 = sfence
  loop: start=0, step=1, limit=4
  $region2: #{tpu_custom_call.1} parent=0 // loop_pre_header
    _
  $region3: #{tpu_custom_call.1} parent=0 // loop_header
    %s19 = sphi 0, %s23
    %p20 = scmp.ge.s32.totalorder %s19, 4
    %s29 = sphi 0, %s31
    %s32 = sphi 0, %s29
    %s33 = sphi 0, %s32
    %s49 = sphi 0, %s33
    %s55 = sphi 0, %s57
    %s58 = sphi 0, %s55
    %s59 = sphi 0, %s58
    %s75 = sphi 0, %s59
  $region4: #{tpu_custom_call.1} parent=0 // loop_header_branch
    %22 = sbr.rel (%p20) target = $region8
  $region5: #{tpu_custom_call.1} parent=0 // loop_body
    %s24 = ssub.s32 %s19, 1
    %s25 = ssub.s32 %s19, 2
    %s26 = sadd.s32 %s19, 1
    %s27 = ssub.s32 %s19, %s26
    %p28 = scmp.eq.s32.totalorder %s27, 0
    %s30 = sadd.s32 %s29, 1
    %s31 = scalar_select %p28, %s29, %s30
    %p34 = pneg %p28
    %p35 = scmp.eq.s32.totalorder %s19, 1
    %p36 = por %p34, %p35
    %p37 = scmp.ne.s32.totalorder %s29, %s32
    %p38 = scmp.eq.s32.totalorder %s19, 0
    %p39 = por %p37, %p38
    %p40 = scmp.ne.s32.totalorder %s29, %s32
    %p41 = scmp.eq.s32.totalorder %s24, 1
    %p42 = por %p40, %p41
    %p43 = scmp.ne.s32.totalorder %s32, %s33
    %p44 = scmp.eq.s32.totalorder %s24, 0
    %p45 = por %p43, %p44
    %p46 = scmp.ne.s32.totalorder %s32, %s33
    %p47 = scmp.eq.s32.totalorder %s25, 1
    %p48 = por %p46, %p47
    %p50 = scmp.ne.s32.totalorder %s33, %s49
    %p51 = scmp.eq.s32.totalorder %s25, 0
    %p52 = por %p50, %p51
    %s53 = ssub.s32 %s19, %s26
    %p54 = scmp.eq.s32.totalorder %s53, 0
    %s56 = sadd.s32 %s55, 1
    %s57 = scalar_select %p54, %s55, %s56
    %p60 = pneg %p54
    %p61 = scmp.eq.s32.totalorder %s19, 1
    %p62 = por %p60, %p61
    %p63 = scmp.ne.s32.totalorder %s55, %s58
    %p64 = scmp.eq.s32.totalorder %s19, 0
    %p65 = por %p63, %p64
    %p66 = scmp.ne.s32.totalorder %s55, %s58
    %p67 = scmp.eq.s32.totalorder %s24, 1
    %p68 = por %p66, %p67
    %p69 = scmp.ne.s32.totalorder %s58, %s59
    %p70 = scmp.eq.s32.totalorder %s24, 0
    %p71 = por %p69, %p70
    %p72 = scmp.ne.s32.totalorder %s58, %s59
    %p73 = scmp.eq.s32.totalorder %s25, 1
    %p74 = por %p72, %p73
    %p76 = scmp.ne.s32.totalorder %s59, %s75
    %p77 = scmp.eq.s32.totalorder %s25, 0
    %p78 = por %p76, %p77
    %p79 = scmp.le.s32.totalorder 1, %s19
    %p80 = scmp.lt.s32.totalorder %s19, 3
    %p81 = pnand %p79, %p80
    %p82 = pneg %p81
    // Predicated region
    $region9: #{tpu_custom_call.1} parent=5 // pred_check
      _
    $region10: #{tpu_custom_call.1} parent=5 // pred_check_branch
      %84 = sbr.rel (%p81) target = $region12
    $region11: #{tpu_custom_call.1} parent=5 // pred_region
      %s85 = ssub.s32 %s19, 1
    $region12: #{tpu_custom_call.1} parent=5 // pred_fallthru
      _
    %p86 = scmp.lt.s32.totalorder %s19, 2
    // Predicated region
    $region13: #{tpu_custom_call.1} parent=5 // pred_check
      %p87 = pneg %p86
    $region14: #{tpu_custom_call.1} parent=5 // pred_check_branch
      %89 = sbr.rel (%p87) target = $region16
    $region15: #{tpu_custom_call.1} parent=5 // pred_region
      // Predicated region
      $region17: #{tpu_custom_call.1} parent=15 // pred_check
        %p90 = pneg %p39
      $region18: #{tpu_custom_call.1} parent=15 // pred_check_branch
        %92 = sbr.rel (%p90) target = $region20
      $region19: #{tpu_custom_call.1} parent=15 // pred_region
        %p93 = scmp.lt.s32.totalorder %s19, 1
        %s94 = scalar_select %p93, %s19, 1
        %s95 = smul.addr %s94, 8
        %s96 = smul.addr %s95, 8
        %s97 = scalar_lea.vmem %s2, %s96
      $region20: #{tpu_custom_call.1} parent=15 // pred_fallthru
        _
    $region16: #{tpu_custom_call.1} parent=5 // pred_fallthru
      _
    %p98 = scmp.le.s32.totalorder 1, %s19
    %p99 = scmp.lt.s32.totalorder %s19, 3
    %p100 = pnand %p98, %p99
    %p101 = pneg %p100
    // Predicated region
    $region21: #{tpu_custom_call.1} parent=5 // pred_check
      _
    $region22: #{tpu_custom_call.1} parent=5 // pred_check_branch
      %103 = sbr.rel (%p100) target = $region24
    $region23: #{tpu_custom_call.1} parent=5 // pred_region
      %s104 = ssub.s32 %s19, 1
      %p105 = scmp.lt.s32.totalorder %s24, 1
      %s106 = scalar_select %p105, %s24, 1
      %s107 = smul.addr %s106, 8
      %s108 = smul.addr %s107, 8
      %s109 = scalar_lea.vmem %s2, %s108
      %p110 = pneg %p45
      %p111 = pneg %p42
      %p112 = pneg %p71
      %p113 = pneg %p68
      %p114 = scmp.lt.s32.totalorder %s24, 1
      %s115 = scalar_select %p114, %s24, 1
      %s116 = smul.addr %s115, 8
      %s117 = smul.addr %s116, 8
      %s118 = scalar_lea.vmem %s3, %s117
      %p119 = scmp.lt.s32.totalorder %s24, 1
      %s120 = scalar_select %p119, %s24, 1
      %s121 = smul.addr %s120, 8
      %s122 = smul.addr %s121, 8
      %s123 = scalar_lea.vmem %s2, %s122
      %p124 = scmp.lt.s32.totalorder %s24, 1
      %s125 = scalar_select %p124, %s24, 1
      %s126 = smul.addr %s125, 8
      %s127 = smul.addr %s126, 8
      %s128 = scalar_lea.vmem %s3, %s127
      %s130 = sld [smem:[#allocation4 + %s24]]
      %s131 = sld [smem:[#allocation5 + %s24]]
      %v132 = vlaneseq
      %v133 = vshrl.u32 %v132, 7
      %v134 = vadd.s32 %v133, 8
      %v135 = vlaneseq
      %v136 = vand.u32 %v135, 127
      %v137 = vstv %s131
      %v138 = vadd.s32 %v133, %v137
      %v139 = vadd.s32 %v134, %v137
      %vm140 = vcmp.gt.s32.totalorder %v138, 0
      %v141 = vsel %vm140, %v138, 0
      %vm142 = vcmp.gt.s32.totalorder %v139, 0
      %v143 = vsel %vm142, %v139, 0
      %vm144 = vcmp.lt.s32.totalorder %v141, 15
      %v145 = vsel %vm144, %v141, 15
      %vm146 = vcmp.lt.s32.totalorder %v143, 15
      %v147 = vsel %vm146, %v143, 15
      %vm148 = vcmp.eq.s32.totalorder %v145, %v136
      %vm149 = vcmp.eq.s32.totalorder %v147, %v136
      %v150 = vsel %vm148, 1, 0
      %v151 = vsel %vm149, 1, 0
      %v152 = vcvt.s32.f32 %v150
      %v153 = vcvt.s32.f32 %v151
      %v154 = vpack.c.bf16 %v153, %v152
      %v155 = vstv %s130
      %v156 = vadd.s32 %v133, %v155
      %v157 = vadd.s32 %v134, %v155
      %vm158 = vcmp.gt.s32.totalorder %v156, 0
      %v159 = vsel %vm158, %v156, 0
      %vm160 = vcmp.gt.s32.totalorder %v157, 0
      %v161 = vsel %vm160, %v157, 0
      %vm162 = vcmp.lt.s32.totalorder %v159, 15
      %v163 = vsel %vm162, %v159, 15
      %vm164 = vcmp.lt.s32.totalorder %v161, 15
      %v165 = vsel %vm164, %v161, 15
      %vm166 = vcmp.eq.s32.totalorder %v163, %v136
      %vm167 = vcmp.eq.s32.totalorder %v165, %v136
      %v168 = vsel %vm166, 1, 0
      %v169 = vsel %vm167, 1, 0
      %v170 = vcvt.s32.f32 %v168
      %v171 = vcvt.s32.f32 %v169
      %v172 = vpack.c.bf16 %v171, %v170
      %v173 = vld [vmem:[%s123] sm:$0xff]
      %v174 = vld [vmem:[%s123 + $0x8] sm:$0xff]
      %v175 = vpack.c.bf16 %v174, %v173
      %vm176 = vcmask 130048
      %v178 = vsel %vm176, %v154, 0
      %180 = vmatprep.subr.bf16.mxu0 0
      %181 = vmatpush1.bf16.msra.mxu0 %v175
      %182 = vmatprep.subr.bf16.mxu0 0
      %183 = vmatpush1.bf16.msra.mxu0 0
      %184 = vmatprep.subr.bf16.mxu0 0
      %185 = vmatpush1.bf16.msra.mxu0 0
      %186 = vmatprep.subr.bf16.mxu0 0
      %187 = vmatpush1.bf16.msra.mxu0 0
      %188 = vmatprep.subr.bf16.mxu0 0
      %189 = vmatpush1.bf16.msra.mxu0 0
      %190 = vmatprep.subr.bf16.mxu0 0
      %191 = vmatpush1.bf16.msra.mxu0 0
      %192 = vmatprep.subr.bf16.mxu0 0
      %193 = vmatpush1.bf16.msra.mxu0 0
      %194 = vmatprep.subr.bf16.mxu0 0
      %195 = vmatpush1.bf16.msra.mxu0 0
      %196 = vmatprep.subr.bf16.mxu0 0
      %197 = vmatpush1.bf16.msra.mxu0 0
      %198 = vmatprep.subr.bf16.mxu0 0
      %199 = vmatpush1.bf16.msra.mxu0 0
      %200 = vmatprep.subr.bf16.mxu0 0
      %201 = vmatpush1.bf16.msra.mxu0 0
      %202 = vmatprep.subr.bf16.mxu0 0
      %203 = vmatpush1.bf16.msra.mxu0 0
      %204 = vmatprep.subr.bf16.mxu0 0
      %205 = vmatpush1.bf16.msra.mxu0 0
      %206 = vmatprep.subr.bf16.mxu0 0
      %207 = vmatpush1.bf16.msra.mxu0 0
      %208 = vmatprep.subr.bf16.mxu0 0
      %209 = vmatpush1.bf16.msra.mxu0 0
      %210 = vmatprep.subr.bf16.mxu0 0
      %211 = vmatpush1.bf16.msra.mxu0 0
      %212 = vmatprep.mubr.bf16.mxu0 0
      %213 = vmatmul.mubr.bf16.gmra.mrb[0].mxu0 %v178
      %v214 = vpop.f32.mrb[0].mxu0
      %v215 = vadd.f32 0.0, %v214
      %v216 = vpop.f32.mrb[0].mxu0
      %v217 = vpop.f32.mrb[0].mxu0
      %v218 = vadd.f32 0.0, %v217
      %v219 = vpop.f32.mrb[0].mxu0
      %220 = vdwg.mxu0
      %v221 = vpack.c.bf16 %v218, %v215
      %222 = vst.msk [vmem:[#allocation2] sm:$0xff] %vm176, %v221
      %v223 = vld [vmem:[%s123 + $0x10] sm:$0xff]
      %v224 = vld [vmem:[%s123 + $0x18] sm:$0xff]
      %v225 = vpack.c.bf16 %v224, %v223
      %226 = vmatprep.subr.bf16.mxu0 0
      %227 = vmatpush1.bf16.msra.mxu0 %v225
      %228 = vmatprep.subr.bf16.mxu0 0
      %229 = vmatpush1.bf16.msra.mxu0 0
      %230 = vmatprep.subr.bf16.mxu0 0
      %231 = vmatpush1.bf16.msra.mxu0 0
      %232 = vmatprep.subr.bf16.mxu0 0
      %233 = vmatpush1.bf16.msra.mxu0 0
      %234 = vmatprep.subr.bf16.mxu0 0
      %235 = vmatpush1.bf16.msra.mxu0 0
      %236 = vmatprep.subr.bf16.mxu0 0
      %237 = vmatpush1.bf16.msra.mxu0 0
      %238 = vmatprep.subr.bf16.mxu0 0
      %239 = vmatpush1.bf16.msra.mxu0 0
      %240 = vmatprep.subr.bf16.mxu0 0
      %241 = vmatpush1.bf16.msra.mxu0 0
      %242 = vmatprep.subr.bf16.mxu0 0
      %243 = vmatpush1.bf16.msra.mxu0 0
      %244 = vmatprep.subr.bf16.mxu0 0
      %245 = vmatpush1.bf16.msra.mxu0 0
      %246 = vmatprep.subr.bf16.mxu0 0
      %247 = vmatpush1.bf16.msra.mxu0 0
      %248 = vmatprep.subr.bf16.mxu0 0
      %249 = vmatpush1.bf16.msra.mxu0 0
      %250 = vmatprep.subr.bf16.mxu0 0
      %251 = vmatpush1.bf16.msra.mxu0 0
      %252 = vmatprep.subr.bf16.mxu0 0
      %253 = vmatpush1.bf16.msra.mxu0 0
      %254 = vmatprep.subr.bf16.mxu0 0
      %255 = vmatpush1.bf16.msra.mxu0 0
      %256 = vmatprep.subr.bf16.mxu0 0
      %257 = vmatpush1.bf16.msra.mxu0 0
      %258 = vmatprep.mubr.bf16.mxu0 0
      %259 = vmatmul.mubr.bf16.gmra.mrb[0].mxu0 %v178
      %v260 = vpop.f32.mrb[0].mxu0
      %v261 = vadd.f32 0.0, %v260
      %v262 = vpop.f32.mrb[0].mxu0
      %v263 = vpop.f32.mrb[0].mxu0
      %v264 = vadd.f32 0.0, %v263
      %v265 = vpop.f32.mrb[0].mxu0
      %266 = vdwg.mxu0
      %v267 = vpack.c.bf16 %v264, %v261
      %268 = vst.msk [vmem:[#allocation2 + $0x8] sm:$0xff] %vm176, %v267
      %v269 = vld [vmem:[%s123 + $0x20] sm:$0xff]
      %v270 = vld [vmem:[%s123 + $0x28] sm:$0xff]
      %v271 = vpack.c.bf16 %v270, %v269
      %272 = vmatprep.subr.bf16.mxu0 0
      %273 = vmatpush1.bf16.msra.mxu0 %v271
      %274 = vmatprep.subr.bf16.mxu0 0
      %275 = vmatpush1.bf16.msra.mxu0 0
      %276 = vmatprep.subr.bf16.mxu0 0
      %277 = vmatpush1.bf16.msra.mxu0 0
      %278 = vmatprep.subr.bf16.mxu0 0
      %279 = vmatpush1.bf16.msra.mxu0 0
      %280 = vmatprep.subr.bf16.mxu0 0
      %281 = vmatpush1.bf16.msra.mxu0 0
      %282 = vmatprep.subr.bf16.mxu0 0
      %283 = vmatpush1.bf16.msra.mxu0 0
      %284 = vmatprep.subr.bf16.mxu0 0
      %285 = vmatpush1.bf16.msra.mxu0 0
      %286 = vmatprep.subr.bf16.mxu0 0
      %287 = vmatpush1.bf16.msra.mxu0 0
      %288 = vmatprep.subr.bf16.mxu0 0
      %289 = vmatpush1.bf16.msra.mxu0 0
      %290 = vmatprep.subr.bf16.mxu0 0
      %291 = vmatpush1.bf16.msra.mxu0 0
      %292 = vmatprep.subr.bf16.mxu0 0
      %293 = vmatpush1.bf16.msra.mxu0 0
      %294 = vmatprep.subr.bf16.mxu0 0
      %295 = vmatpush1.bf16.msra.mxu0 0
      %296 = vmatprep.subr.bf16.mxu0 0
      %297 = vmatpush1.bf16.msra.mxu0 0
      %298 = vmatprep.subr.bf16.mxu0 0
      %299 = vmatpush1.bf16.msra.mxu0 0
      %300 = vmatprep.subr.bf16.mxu0 0
      %301 = vmatpush1.bf16.msra.mxu0 0
      %302 = vmatprep.subr.bf16.mxu0 0
      %303 = vmatpush1.bf16.msra.mxu0 0
      %304 = vmatprep.mubr.bf16.mxu0 0
      %305 = vmatmul.mubr.bf16.gmra.mrb[0].mxu0 %v178
      %v306 = vpop.f32.mrb[0].mxu0
      %v307 = vadd.f32 0.0, %v306
      %v308 = vpop.f32.mrb[0].mxu0
      %v309 = vpop.f32.mrb[0].mxu0
      %v310 = vadd.f32 0.0, %v309
      %v311 = vpop.f32.mrb[0].mxu0
      %312 = vdwg.mxu0
      %v313 = vpack.c.bf16 %v310, %v307
      %314 = vst.msk [vmem:[#allocation2 + $0x10] sm:$0xff] %vm176, %v313
      %v315 = vld [vmem:[%s123 + $0x30] sm:$0xff]
      %v316 = vld [vmem:[%s123 + $0x38] sm:$0xff]
      %v317 = vpack.c.bf16 %v316, %v315
      %318 = vmatprep.subr.bf16.mxu0 0
      %319 = vmatpush1.bf16.msra.mxu0 %v317
      %320 = vmatprep.subr.bf16.mxu0 0
      %321 = vmatpush1.bf16.msra.mxu0 0
      %322 = vmatprep.subr.bf16.mxu0 0
      %323 = vmatpush1.bf16.msra.mxu0 0
      %324 = vmatprep.subr.bf16.mxu0 0
      %325 = vmatpush1.bf16.msra.mxu0 0
      %326 = vmatprep.subr.bf16.mxu0 0
      %327 = vmatpush1.bf16.msra.mxu0 0
      %328 = vmatprep.subr.bf16.mxu0 0
      %329 = vmatpush1.bf16.msra.mxu0 0
      %330 = vmatprep.subr.bf16.mxu0 0
      %331 = vmatpush1.bf16.msra.mxu0 0
      %332 = vmatprep.subr.bf16.mxu0 0
      %333 = vmatpush1.bf16.msra.mxu0 0
      %334 = vmatprep.subr.bf16.mxu0 0
      %335 = vmatpush1.bf16.msra.mxu0 0
      %336 = vmatprep.subr.bf16.mxu0 0
      %337 = vmatpush1.bf16.msra.mxu0 0
      %338 = vmatprep.subr.bf16.mxu0 0
      %339 = vmatpush1.bf16.msra.mxu0 0
      %340 = vmatprep.subr.bf16.mxu0 0
      %341 = vmatpush1.bf16.msra.mxu0 0
      %342 = vmatprep.subr.bf16.mxu0 0
      %343 = vmatpush1.bf16.msra.mxu0 0
      %344 = vmatprep.subr.bf16.mxu0 0
      %345 = vmatpush1.bf16.msra.mxu0 0
      %346 = vmatprep.subr.bf16.mxu0 0
      %347 = vmatpush1.bf16.msra.mxu0 0
      %348 = vmatprep.subr.bf16.mxu0 0
      %349 = vmatpush1.bf16.msra.mxu0 0
      %350 = vmatprep.mubr.bf16.mxu0 0
      %351 = vmatmul.mubr.bf16.gmra.mrb[0].mxu0 %v178
      %v352 = vpop.f32.mrb[0].mxu0
      %v353 = vadd.f32 0.0, %v352
      %v354 = vpop.f32.mrb[0].mxu0
      %v355 = vpop.f32.mrb[0].mxu0
      %v356 = vadd.f32 0.0, %v355
      %v357 = vpop.f32.mrb[0].mxu0
      %358 = vdwg.mxu0
      %v359 = vpack.c.bf16 %v356, %v353
      %360 = vst.msk [vmem:[#allocation2 + $0x18] sm:$0xff] %vm176, %v359
      %v361 = vld [vmem:[#allocation2] sm:$0xff]
      %v362 = vld [vmem:[#allocation2 + $0x8] sm:$0xff]
      %v363 = vld [vmem:[#allocation2 + $0x10] sm:$0xff]
      %v364 = vld [vmem:[#allocation2 + $0x18] sm:$0xff]
      %v366 = vsel %vm176, %v361, 0
      %v369 = vsel %vm176, %v362, 0
      %v372 = vsel %vm176, %v363, 0
      %v375 = vsel %vm176, %v364, 0
      %v378 = vsel %vm176, %v172, 0
      %380 = vmatprep.subr.bf16.mxu0 0
      %381 = vmatpush1.bf16.xpose.msra.mxu0 %v378
      %382 = vmatprep.subr.bf16.mxu0 0
      %383 = vmatpush1.bf16.xpose.msra.mxu0 0
      %384 = vmatprep.subr.bf16.mxu0 0
      %385 = vmatpush1.bf16.xpose.msra.mxu0 0
      %386 = vmatprep.subr.bf16.mxu0 0
      %387 = vmatpush1.bf16.xpose.msra.mxu0 0
      %388 = vmatprep.subr.bf16.mxu0 0
      %389 = vmatpush1.bf16.xpose.msra.mxu0 0
      %390 = vmatprep.subr.bf16.mxu0 0
      %391 = vmatpush1.bf16.xpose.msra.mxu0 0
      %392 = vmatprep.subr.bf16.mxu0 0
      %393 = vmatpush1.bf16.xpose.msra.mxu0 0
      %394 = vmatprep.subr.bf16.mxu0 0
      %395 = vmatpush1.bf16.xpose.msra.mxu0 0
      %396 = vmatprep.subr.bf16.mxu0 0
      %397 = vmatpush1.bf16.xpose.msra.mxu0 0
      %398 = vmatprep.subr.bf16.mxu0 0
      %399 = vmatpush1.bf16.xpose.msra.mxu0 0
      %400 = vmatprep.subr.bf16.mxu0 0
      %401 = vmatpush1.bf16.xpose.msra.mxu0 0
      %402 = vmatprep.subr.bf16.mxu0 0
      %403 = vmatpush1.bf16.xpose.msra.mxu0 0
      %404 = vmatprep.subr.bf16.mxu0 0
      %405 = vmatpush1.bf16.xpose.msra.mxu0 0
      %406 = vmatprep.subr.bf16.mxu0 0
      %407 = vmatpush1.bf16.xpose.msra.mxu0 0
      %408 = vmatprep.subr.bf16.mxu0 0
      %409 = vmatpush1.bf16.xpose.msra.mxu0 0
      %410 = vmatprep.subr.bf16.mxu0 0
      %411 = vmatpush1.bf16.xpose.msra.mxu0 0
      %412 = vmatprep.mubr.bf16.mxu0 0
      %413 = vmatmul.mubr.bf16.gmra.mrb[0].mxu0 %v366
      %v414 = vpop.f32.mrb[0].mxu0
      %v415 = vadd.f32 0.0, %v414
      %v416 = vpop.f32.mrb[0].mxu0
      %v417 = vpop.f32.mrb[0].mxu0
      %v418 = vadd.f32 0.0, %v417
      %v419 = vpop.f32.mrb[0].mxu0
      %420 = vmatprep.mubr.bf16.mxu0 0
      %421 = vmatmul.mubr.bf16.gmra.mrb[0].mxu0 %v369
      %v422 = vpop.f32.mrb[0].mxu0
      %v423 = vadd.f32 0.0, %v422
      %v424 = vpop.f32.mrb[0].mxu0
      %v425 = vpop.f32.mrb[0].mxu0
      %v426 = vadd.f32 0.0, %v425
      %v427 = vpop.f32.mrb[0].mxu0
      %428 = vmatprep.mubr.bf16.mxu0 0
      %429 = vmatmul.mubr.bf16.gmra.mrb[0].mxu0 %v372
      %v430 = vpop.f32.mrb[0].mxu0
      %v431 = vadd.f32 0.0, %v430
      %v432 = vpop.f32.mrb[0].mxu0
      %v433 = vpop.f32.mrb[0].mxu0
      %v434 = vadd.f32 0.0, %v433
      %v435 = vpop.f32.mrb[0].mxu0
      %436 = vmatprep.mubr.bf16.mxu0 0
      %437 = vmatmul.mubr.bf16.gmra.mrb[0].mxu0 %v375
      %v438 = vpop.f32.mrb[0].mxu0
      %v439 = vadd.f32 0.0, %v438
      %v440 = vpop.f32.mrb[0].mxu0
      %v441 = vpop.f32.mrb[0].mxu0
      %v442 = vadd.f32 0.0, %v441
      %v443 = vpop.f32.mrb[0].mxu0
      %444 = vdwg.mxu0
      %445 = vst.msk [vmem:[%s128] sm:$0xff] %vm176, %v415
      %446 = vst.msk [vmem:[%s128 + $0x8] sm:$0xff] %vm176, %v418
      %447 = vst.msk [vmem:[%s128 + $0x10] sm:$0xff] %vm176, %v423
      %448 = vst.msk [vmem:[%s128 + $0x18] sm:$0xff] %vm176, %v426
      %449 = vst.msk [vmem:[%s128 + $0x20] sm:$0xff] %vm176, %v431
      %450 = vst.msk [vmem:[%s128 + $0x28] sm:$0xff] %vm176, %v434
      %451 = vst.msk [vmem:[%s128 + $0x30] sm:$0xff] %vm176, %v439
      %452 = vst.msk [vmem:[%s128 + $0x38] sm:$0xff] %vm176, %v442
      %p453 = scmp.lt.s32.totalorder %s24, 1
      %s454 = scalar_select %p453, %s24, 1
      %s455 = smul.addr %s454, 8
      %s456 = smul.addr %s455, 8
      %s457 = scalar_lea.vmem %s3, %s456
      // Predicated region
      $region25: #{tpu_custom_call.1} parent=23 // pred_check
        %p458 = pneg %p68
      $region26: #{tpu_custom_call.1} parent=23 // pred_check_branch
        %460 = sbr.rel (%p458) target = $region28
      $region27: #{tpu_custom_call.1} parent=23 // pred_region
        _
      $region28: #{tpu_custom_call.1} parent=23 // pred_fallthru
        _
    $region24: #{tpu_custom_call.1} parent=5 // pred_fallthru
      _
    %p461 = scmp.le.s32.totalorder 2, %s19
    // Predicated region
    $region29: #{tpu_custom_call.1} parent=5 // pred_check
      %p462 = pneg %p461
    $region30: #{tpu_custom_call.1} parent=5 // pred_check_branch
      %464 = sbr.rel (%p462) target = $region32
    $region31: #{tpu_custom_call.1} parent=5 // pred_region
      %s465 = ssub.s32 %s19, 2
      // Predicated region
      $region33: #{tpu_custom_call.1} parent=31 // pred_check
        %p466 = pneg %p74
      $region34: #{tpu_custom_call.1} parent=31 // pred_check_branch
        %468 = sbr.rel (%p466) target = $region36
      $region35: #{tpu_custom_call.1} parent=31 // pred_region
        %p469 = scmp.lt.s32.totalorder %s25, 1
        %s470 = scalar_select %p469, %s25, 1
        %s471 = smul.addr %s470, 8
        %s472 = smul.addr %s471, 8
        %s473 = scalar_lea.vmem %s3, %s472
      $region36: #{tpu_custom_call.1} parent=31 // pred_fallthru
        _
    $region32: #{tpu_custom_call.1} parent=5 // pred_fallthru
      _
  $region6: #{tpu_custom_call.1} parent=0 // loop_footer
    %s23 = sadd.s32 1, %s19
  $region7: #{tpu_custom_call.1} parent=0 // loop_footer_branch
    %18 = sbr.rel target = $region3
  $region8: #{tpu_custom_call.1} parent=0 // loop_exit
    _

</llo_original>
